<compile_context>
chip_gen: v7x
topology: tpu7x:2x2x1
jax: 0.10.0
libtpu: 0.0.40
codegen_flags: <defaults>
</compile_context>

<pallas_src>
import functools

import jax
import jax.numpy as jnp
from jax import lax
from jax.experimental import pallas as pl
from jax.experimental.pallas import tpu as pltpu

GAMMA = 2.0
ALPHA = 0.25
SIZE_AVERAGE = True

# Number of independent row-stream slices.  v7x has 2 TensorCores/chip; the
# leading "parallel" grid axis lets Mosaic shard the slices across them.  On
# single-core chips this is just a (cheap) sequential outer loop, and it also
# gives two f32 partial sums instead of one (slightly better accumulation).
NUM_CORE_SPLITS = 2


def _round_up(x, m):
    return (x + m - 1) // m * m


def focal_loss_kernel(x_ref, w_ref, out_ref, *, alpha, gamma, n_rows, tile_n,
                      tiles_per_core):
    p = pl.program_id(0)      # core-split (parallel)
    i = pl.program_id(1)      # row-tile within the split (reduction)

    @pl.when(i == 0)
    def _init():
        out_ref[...] = jnp.zeros_like(out_ref)

    x = x_ref[...].astype(jnp.float32)        # (T, C) logits row tile
    w = w_ref[...]                            # (1, T) per-row target counts (f32)

    # Row-wise log-sum-exp; only column 0 of log_softmax is ever needed, so the
    # full (T, C) logpt is never materialized.  exp(x - m) is reused for pt.
    m = jnp.max(x, axis=1, keepdims=True)                      # (T, 1)
    e = jnp.exp(x - m)                                         # (T, C)
    s = jnp.sum(e, axis=1, keepdims=True)                      # (T, 1)
    lp0 = (x[:, 0:1] - m) - jnp.log(s)                         # (T, 1) = logpt[:, 0]
    pt = e[:, 0:1] * pl.reciprocal(s, approx=False)            # == exp(lp0), no 2nd exp

    d = 1.0 - pt
    if gamma == 2.0:
        focal = d * d                          # VPU multiply instead of pow->exp(log())
    elif float(gamma) == int(gamma) and 0 <= int(gamma) <= 4:
        focal = jnp.ones_like(d)
        for _ in range(int(gamma)):
            focal = focal * d
    else:
        focal = d ** gamma
    loss = (-alpha) * focal * lp0                              # (T, 1)

    # Mask the ragged tail and fully-redundant (clamped) tiles: garbage rows
    # can be inf/NaN, so select (not multiply) them to exactly 0.
    row0 = (p * tiles_per_core + i) * tile_n
    rows = lax.broadcasted_iota(jnp.int32, (tile_n, 1), 0) + row0
    loss = jnp.where(rows < n_rows, loss, 0.0)

    # Weighted partial sum: sum_j w[j]*f(lp0[j]) == sum_i f(lp0[target[i]]).
    # Lane-dense (1,T) x sublane (T,1) is the MXU-native orientation; MXU is
    # otherwise idle in this memory-bound kernel.
    contrib = jnp.dot(w, loss, preferred_element_type=jnp.float32)   # (1, 1)
    out_ref[...] = out_ref[...] + contrib.reshape(1, 1, 1)


def _pick_tile_n(n, c, dtype):
    """Row-tile size: ~8 MiB of (lane-padded) logits per pipeline buffer."""
    itemsize = jnp.dtype(dtype).itemsize
    c_lanes = _round_up(max(int(c), 1), 128)       # VMEM lane padding of last dim
    row_bytes = c_lanes * itemsize
    budget_bytes = 8 * 1024 * 1024                 # per buffer; x2 for double-buffering
    t = budget_bytes // row_bytes
    # Multiple of 128 rows: keeps the lane-dense (1, tile_n) weight block
    # 128-aligned and covers the 8/16/32 sublane packing for any dtype.
    t = max(128, (int(t) // 128) * 128)
    t = min(t, _round_up(n, 128))                  # no point exceeding the row count
    return int(t)


def focal_loss(logits, target, gamma=GAMMA, alpha=ALPHA,
               size_average=SIZE_AVERAGE, tile_n=None):
    n, c = logits.shape
    if tile_n is None:
        tile_n = _pick_tile_n(n, c, logits.dtype)
    else:
        tile_n = max(128, _round_up(int(tile_n), 128))

    n_tiles = pl.cdiv(n, tile_n)
    tiles_per_core = pl.cdiv(n_tiles, NUM_CORE_SPLITS)

    # Glue (O(N)): torch.gather(dim=0, index=target.view(-1,1)) picks
    # logpt[target[i], 0]; reformulate as per-row counts so the kernel is
    # O(N*C).  Lane-dense (1, n_w) layout; padded columns stay zero.
    n_w = n_tiles * tile_n
    w = jnp.zeros((1, n_w), jnp.float32).at[0, target.astype(jnp.int32)].add(1.0)

    scale = (1.0 / float(n)) if size_average else 1.0

    kernel = functools.partial(
        focal_loss_kernel, alpha=float(alpha), gamma=float(gamma),
        n_rows=int(n), tile_n=int(tile_n), tiles_per_core=int(tiles_per_core))

    def x_map(p, i):
        # Clamp so blocks past the last real tile re-read a valid tile (their
        # contribution is masked to zero in-kernel).  Avoids padding the logits.
        return (jnp.minimum(p * tiles_per_core + i, n_tiles - 1), 0)

    def w_map(p, i):
        return (0, jnp.minimum(p * tiles_per_core + i, n_tiles - 1))

    partials = pl.pallas_call(
        kernel,
        out_shape=jax.ShapeDtypeStruct((NUM_CORE_SPLITS, 8, 128), jnp.float32),
        grid_spec=pltpu.PrefetchScalarGridSpec(
            num_scalar_prefetch=0,
            grid=(NUM_CORE_SPLITS, tiles_per_core),
            in_specs=[
                pl.BlockSpec((tile_n, c), x_map),      # logits row tile
                pl.BlockSpec((1, tile_n), w_map),      # lane-dense target counts
            ],
            # Resident per-core accumulator block; every element carries the
            # same running sum (full-vreg add, no masked sub-stores).
            out_specs=pl.BlockSpec((1, 8, 128), lambda p, i: (p, 0, 0)),
        ),
        compiler_params=pltpu.CompilerParams(
            dimension_semantics=("parallel", "arbitrary"),
            vmem_limit_bytes=40 * 1024 * 1024,
        ),
    )(logits, w)

    return jnp.sum(partials[:, 0, 0]) * scale


def _reference(x, target, gamma=GAMMA, alpha=ALPHA):
    logpt = jax.nn.log_softmax(x, axis=1)
    lp = logpt[target, 0]                   # gather(dim=0)[:, 0] semantics
    pt = jnp.exp(lp)
    return jnp.mean(-alpha * (1.0 - pt) ** gamma * lp)


if __name__ == "__main__":
    key = jax.random.PRNGKey(0)
    k1, k2, k3, k4 = jax.random.split(key, 4)

    # Test 1: small single-tile case (N=8, C=32); gather is along dim=0, so
    # valid indices are [0, N).  Exercises the partial (masked) first tile.
    N1, C1 = 8, 32
    x1 = jax.random.normal(k1, (N1, C1), dtype=jnp.float32)
    t1 = jax.random.randint(k2, (N1,), 0, N1, dtype=jnp.int32)
    loss1 = jax.block_until_ready(focal_loss(x1, t1))
    ref1 = _reference(x1, t1)
    assert jnp.allclose(loss1, ref1, atol=1e-5, rtol=1e-5), (loss1, ref1)

    # Test 2: multi-tile grid, ragged tail, and clamped redundant block across
    # the two core slices (N=300, C=16, tile_n=128 -> 3 real tiles over 2x2 grid).
    N2, C2 = 300, 16
    x2 = jax.random.normal(k3, (N2, C2), dtype=jnp.float32)
    t2 = jax.random.randint(k4, (N2,), 0, N2, dtype=jnp.int32)
    loss2 = jax.block_until_ready(focal_loss(x2, t2, tile_n=128))
    ref2 = _reference(x2, t2)
    assert jnp.allclose(loss2, ref2, atol=1e-5, rtol=1e-5), (loss2, ref2)

    print("KERNEL_OK")
</pallas_src>

<mosaic_0001>
module attributes {stable_mosaic.version = 11 : i64} {
  func.func @focal_loss_kernel(%arg0: i32, %arg1: i32, %arg2: memref<128x32xf32, #tpu.memory_space<vmem>>, %arg3: memref<1x128xf32, #tpu.memory_space<vmem>>, %arg4: memref<1x8x128xf32, #tpu.memory_space<vmem>>) attributes {dimension_semantics = [#tpu.dimension_semantics<parallel>, #tpu.dimension_semantics<arbitrary>], iteration_bounds = array<i64: 2, 1>, scalar_prefetch = 0 : i64, scratch_operands = 0 : i64, tpu.core_type = #tpu.core_type<tc>, window_params = [{transform_indices = @transform_0, window_bounds = array<i64: 128, 32>}, {transform_indices = @transform_1, window_bounds = array<i64: 1, 128>}, {transform_indices = @transform_2, window_bounds = array<i64: 1, 8, 128>}]} {
    %c0_i32 = arith.constant 0 : i32
    %0 = arith.cmpi eq, %arg1, %c0_i32 : i32
    %1 = arith.extui %0 : i1 to i32
    %c0_i32_0 = arith.constant 0 : i32
    %2 = arith.cmpi ne, %1, %c0_i32_0 : i32
    scf.if %2 {
      %cst_15 = arith.constant 0.000000e+00 : f32
      %41 = vector.broadcast %cst_15 : f32 to vector<1x8x128xf32>
      %c0_16 = arith.constant 0 : index
      %c0_17 = arith.constant 0 : index
      %c0_18 = arith.constant 0 : index
      %42 = vector.load %arg4[%c0_16, %c0_17, %c0_18] : memref<1x8x128xf32, #tpu.memory_space<vmem>>, vector<1x8x128xf32>
      tpu.vector_store %arg4[%c0_16, %c0_17, %c0_18], %41 {strides = array<i32>} : memref<1x8x128xf32, #tpu.memory_space<vmem>>, vector<1x8x128xf32>,
    } else {
    }
    %c0 = arith.constant 0 : index
    %c0_1 = arith.constant 0 : index
    %3 = vector.load %arg2[%c0, %c0_1] : memref<128x32xf32, #tpu.memory_space<vmem>>, vector<128x32xf32>
    %c0_2 = arith.constant 0 : index
    %c0_3 = arith.constant 0 : index
    %4 = vector.load %arg3[%c0_2, %c0_3] : memref<1x128xf32, #tpu.memory_space<vmem>>, vector<1x128xf32>
    %cst = arith.constant dense<0xFF800000> : vector<128xf32>
    %5 = vector.multi_reduction <maximumf>, %3, %cst [1] : vector<128x32xf32> to vector<128xf32>
    %6 = vector.shape_cast %5 : vector<128xf32> to vector<128x1xf32>
    %7 = vector.broadcast %6 : vector<128x1xf32> to vector<128x32xf32>
    %8 = arith.subf %3, %7 : vector<128x32xf32>
    %9 = math.exp %8 : vector<128x32xf32>
    %cst_4 = arith.constant dense<0.000000e+00> : vector<128xf32>
    %10 = vector.multi_reduction <add>, %9, %cst_4 [1] : vector<128x32xf32> to vector<128xf32>
    %11 = vector.shape_cast %10 : vector<128xf32> to vector<128x1xf32>
    %12 = vector.extract_strided_slice %3 {offsets = [0, 0], sizes = [128, 1], strides = [1, 1]} : vector<128x32xf32> to vector<128x1xf32>
    %13 = arith.subf %12, %6 : vector<128x1xf32>
    %14 = math.log %11 : vector<128x1xf32>
    %15 = arith.subf %13, %14 : vector<128x1xf32>
    %16 = vector.extract_strided_slice %9 {offsets = [0, 0], sizes = [128, 1], strides = [1, 1]} : vector<128x32xf32> to vector<128x1xf32>
    %17 = tpu.reciprocal %11 : vector<128x1xf32> -> vector<128x1xf32>
    %18 = arith.mulf %16, %17 : vector<128x1xf32>
    %cst_5 = arith.constant 1.000000e+00 : f32
    %19 = vector.broadcast %cst_5 : f32 to vector<128x1xf32>
    %20 = arith.subf %19, %18 : vector<128x1xf32>
    %21 = arith.mulf %20, %20 : vector<128x1xf32>
    %cst_6 = arith.constant -2.500000e-01 : f32
    %22 = vector.broadcast %cst_6 : f32 to vector<128x1xf32>
    %23 = arith.mulf %22, %21 : vector<128x1xf32>
    %24 = arith.mulf %23, %15 : vector<128x1xf32>
    %c1_i32 = arith.constant 1 : i32
    %25 = arith.muli %arg0, %c1_i32 : i32
    %26 = arith.addi %25, %arg1 : i32
    %c128_i32 = arith.constant 128 : i32
    %27 = arith.muli %26, %c128_i32 : i32
    %28 = tpu.iota {dimensions = array<i32: 0>} : vector<128x1xi32>
    %29 = vector.broadcast %27 : i32 to vector<128x1xi32>
    %30 = arith.addi %28, %29 : vector<128x1xi32>
    %c8_i32 = arith.constant 8 : i32
    %31 = vector.broadcast %c8_i32 : i32 to vector<128x1xi32>
    %32 = arith.cmpi slt, %30, %31 : vector<128x1xi32>
    %cst_7 = arith.constant 0.000000e+00 : f32
    %33 = vector.broadcast %cst_7 : f32 to vector<128x1xf32>
    %34 = arith.select %32, %24, %33 : vector<128x1xi1>, vector<128x1xf32>
    %cst_8 = arith.constant dense<0.000000e+00> : vector<1x1xf32>
    %35 = tpu.matmul %4, %34, %cst_8 {dimension_numbers = #tpu.dot_dimension_numbers<[1], [0], [0], [1], [0, 0, 1, 1], [], []>} : vector<1x128xf32>, vector<128x1xf32>, vector<1x1xf32> -> vector<1x1xf32>
    %c0_9 = arith.constant 0 : index
    %c0_10 = arith.constant 0 : index
    %c0_11 = arith.constant 0 : index
    %36 = vector.load %arg4[%c0_9, %c0_10, %c0_11] : memref<1x8x128xf32, #tpu.memory_space<vmem>>, vector<1x8x128xf32>
    %37 = vector.shape_cast %35 : vector<1x1xf32> to vector<1x1x1xf32>
    %38 = vector.broadcast %37 : vector<1x1x1xf32> to vector<1x8x128xf32>
    %39 = arith.addf %36, %38 : vector<1x8x128xf32>
    %c0_12 = arith.constant 0 : index
    %c0_13 = arith.constant 0 : index
    %c0_14 = arith.constant 0 : index
    %40 = vector.load %arg4[%c0_12, %c0_13, %c0_14] : memref<1x8x128xf32, #tpu.memory_space<vmem>>, vector<1x8x128xf32>
    tpu.vector_store %arg4[%c0_12, %c0_13, %c0_14], %39 {strides = array<i32>} : memref<1x8x128xf32, #tpu.memory_space<vmem>>, vector<1x8x128xf32>,
    return
  }
  func.func @transform_0(%arg0: i32, %arg1: i32) -> (i32, i32) {
    %c1_i32 = arith.constant 1 : i32
    %0 = arith.muli %arg0, %c1_i32 : i32
    %1 = arith.addi %0, %arg1 : i32
    %c0_i32 = arith.constant 0 : i32
    %2 = arith.minsi %1, %c0_i32 : i32
    %c0_i32_0 = arith.constant 0 : i32
    %c0_i32_1 = arith.constant 0 : i32
    return %2, %c0_i32_0 : i32, i32
  }
  func.func @transform_1(%arg0: i32, %arg1: i32) -> (i32, i32) {
    %c1_i32 = arith.constant 1 : i32
    %0 = arith.muli %arg0, %c1_i32 : i32
    %1 = arith.addi %0, %arg1 : i32
    %c0_i32 = arith.constant 0 : i32
    %2 = arith.minsi %1, %c0_i32 : i32
    %c0_i32_0 = arith.constant 0 : i32
    %c0_i32_1 = arith.constant 0 : i32
    return %c0_i32_0, %2 : i32, i32
  }
  func.func @transform_2(%arg0: i32, %arg1: i32) -> (i32, i32, i32) {
    %c0_i32 = arith.constant 0 : i32
    %c0_i32_0 = arith.constant 0 : i32
    %c0_i32_1 = arith.constant 0 : i32
    return %arg0, %c0_i32, %c0_i32_0 : i32, i32, i32
  }
}

</mosaic_0001>

<llo_original>
// kernel: tpu_custom_call.1
$region0: #{tpu_custom_call.1}
  #allocation0 [shape = 'u32[]', space=smem, size = 0x4, offset = 0x4, fixed_abs, tag = 'smem constant byte address 0x4 - core index']
  #allocation1 [shape = 'u32[144,128]{1,0:T(1,128)}', space=vmem, size = 0x12000, scoped, tag = 'internal scratch']
  %s0 = inlined_call_operand.hbm [shape: f32[8,32], index: 0, kind: input, shape index: {}]
  %s1 = inlined_call_operand.vmem [shape: f32[1,128], index: 1, kind: input, shape index: {}]
  %s2 = inlined_call_operand.hbm [shape: f32[2,8,128], index: 2, kind: output, shape index: {}]
  %s3 = sld [smem:[#allocation0]]
  $region49: #{tpu_custom_call.1} parent=0
    _
  %s5 = ssub.s32 1, %s3
  %s6 = scalar_select 0, %s5, %s3
  $region1: #{tpu_custom_call.1} parent=0
    #allocation2 [shape = 'u8[131072]{0}', space=vmem, size = 0x20000, scoped, tag = 'input window, operand 0']
    #allocation3 [shape = 's32[2]{0}', space=sflag, size = 0x8, scoped, tag = 'scoped memory for tpu_custom_call.1']
    #allocation4 [shape = 's32[2]{0}', space=sflag, size = 0x8, scoped, tag = 'scoped memory for tpu_custom_call.1']
    #allocation5 [shape = 'u8[8192]{0}', space=vmem, size = 0x2000, scoped, tag = 'output window, operand 0']
    %7 = vsyncpa [#allocation3], 0
    %s8 = scalar_lea.sflag [#allocation3], 1
    %9 = vsyncpa %s8, 0
    %10 = vsyncpa [#allocation4], 0
    %s11 = scalar_lea.sflag [#allocation4], 1
    %12 = vsyncpa %s11, 0
    loop: start=0, step=1, limit=4
    $region2: #{tpu_custom_call.1} parent=1 // loop_pre_header
      _
    $region3: #{tpu_custom_call.1} parent=1 // loop_header
      %s14 = sphi 0, %s18
      %p15 = scmp.ge.s32.totalorder %s14, 4
      %s21 = sphi 0, %s33
      %s22 = sphi 0, %s29
      %s23 = sphi 0, %s21
      %s24 = sphi 0, %s22
      %s25 = sphi 0, %s23
      %s26 = sphi 0, %s24
      %s42 = sphi 0, %s44
      %s45 = sphi 0, %s42
      %s46 = sphi 0, %s45
      %s62 = sphi 0, %s46
      %s74 = sphi 0, %s76
      %s77 = sphi 0, %s74
      %s78 = sphi 0, %s77
      %s94 = sphi 0, %s78
      %s100 = sphi 0, %s102
      %s103 = sphi 0, %s100
      %s104 = sphi 0, %s103
      %s120 = sphi 0, %s104
    $region4: #{tpu_custom_call.1} parent=1 // loop_header_branch
      %17 = sbr.rel (%p15) target = $region8
    $region5: #{tpu_custom_call.1} parent=1 // loop_body
      %s19 = ssub.s32 %s14, 1
      %s20 = ssub.s32 %s14, 2
      %s27 = sadd.s32 1, %s22
      %p28 = scmp.ge.s32.totalorder %s27, 1
      %s29 = scalar_select %p28, 0, %s27
      %s30 = sadd.s32 1, %s21
      %s31 = scalar_select %p28, %s30, %s21
      %p32 = scmp.ge.s32.totalorder %s31, 2
      %s33 = scalar_select %p32, 0, %s31
      %s34 = sadd.s32 %s21, %s22
      %p35 = scmp.lt.s32.totalorder %s34, 0
      %s36 = scalar_select %p35, %s34, 0
      %s37 = sadd.s32 %s33, %s29
      %p38 = scmp.lt.s32.totalorder %s37, 0
      %s39 = scalar_select %p38, %s37, 0
      %s40 = ssub.s32 %s36, %s39
      %p41 = scmp.eq.s32.totalorder %s40, 0
      %s43 = sadd.s32 %s42, 1
      %s44 = scalar_select %p41, %s42, %s43
      %p47 = pneg %p41
      %p48 = scmp.eq.s32.totalorder %s14, 1
      %p49 = por %p47, %p48
      %p50 = scmp.ne.s32.totalorder %s42, %s45
      %p51 = scmp.eq.s32.totalorder %s14, 0
      %p52 = por %p50, %p51
      %p53 = scmp.ne.s32.totalorder %s42, %s45
      %p54 = scmp.eq.s32.totalorder %s19, 1
      %p55 = por %p53, %p54
      %p56 = scmp.ne.s32.totalorder %s45, %s46
      %p57 = scmp.eq.s32.totalorder %s19, 0
      %p58 = por %p56, %p57
      %p59 = scmp.ne.s32.totalorder %s45, %s46
      %p60 = scmp.eq.s32.totalorder %s20, 1
      %p61 = por %p59, %p60
      %p63 = scmp.ne.s32.totalorder %s46, %s62
      %p64 = scmp.eq.s32.totalorder %s20, 0
      %p65 = por %p63, %p64
      %s66 = sadd.s32 %s21, %s22
      %p67 = scmp.lt.s32.totalorder %s66, 0
      %s68 = scalar_select %p67, %s66, 0
      %s69 = sadd.s32 %s33, %s29
      %p70 = scmp.lt.s32.totalorder %s69, 0
      %s71 = scalar_select %p70, %s69, 0
      %s72 = ssub.s32 %s68, %s71
      %p73 = scmp.eq.s32.totalorder %s72, 0
      %s75 = sadd.s32 %s74, 1
      %s76 = scalar_select %p73, %s74, %s75
      %p79 = pneg %p73
      %p80 = scmp.eq.s32.totalorder %s14, 1
      %p81 = por %p79, %p80
      %p82 = scmp.ne.s32.totalorder %s74, %s77
      %p83 = scmp.eq.s32.totalorder %s14, 0
      %p84 = por %p82, %p83
      %p85 = scmp.ne.s32.totalorder %s74, %s77
      %p86 = scmp.eq.s32.totalorder %s19, 1
      %p87 = por %p85, %p86
      %p88 = scmp.ne.s32.totalorder %s77, %s78
      %p89 = scmp.eq.s32.totalorder %s19, 0
      %p90 = por %p88, %p89
      %p91 = scmp.ne.s32.totalorder %s77, %s78
      %p92 = scmp.eq.s32.totalorder %s20, 1
      %p93 = por %p91, %p92
      %p95 = scmp.ne.s32.totalorder %s78, %s94
      %p96 = scmp.eq.s32.totalorder %s20, 0
      %p97 = por %p95, %p96
      %s98 = ssub.s32 %s21, %s33
      %p99 = scmp.eq.s32.totalorder %s98, 0
      %s101 = sadd.s32 %s100, 1
      %s102 = scalar_select %p99, %s100, %s101
      %p105 = pneg %p99
      %p106 = scmp.eq.s32.totalorder %s14, 1
      %p107 = por %p105, %p106
      %p108 = scmp.ne.s32.totalorder %s100, %s103
      %p109 = scmp.eq.s32.totalorder %s14, 0
      %p110 = por %p108, %p109
      %p111 = scmp.ne.s32.totalorder %s100, %s103
      %p112 = scmp.eq.s32.totalorder %s19, 1
      %p113 = por %p111, %p112
      %p114 = scmp.ne.s32.totalorder %s103, %s104
      %p115 = scmp.eq.s32.totalorder %s19, 0
      %p116 = por %p114, %p115
      %p117 = scmp.ne.s32.totalorder %s103, %s104
      %p118 = scmp.eq.s32.totalorder %s20, 1
      %p119 = por %p117, %p118
      %p121 = scmp.ne.s32.totalorder %s104, %s120
      %p122 = scmp.eq.s32.totalorder %s20, 0
      %p123 = por %p121, %p122
      %p124 = scmp.le.s32.totalorder 1, %s14
      %p125 = scmp.lt.s32.totalorder %s14, 3
      %p126 = pnand %p124, %p125
      %p127 = pneg %p126
      // Predicated region
      $region9: #{tpu_custom_call.1} parent=5 // pred_check
        _
      $region10: #{tpu_custom_call.1} parent=5 // pred_check_branch
        %129 = sbr.rel (%p126) target = $region12
      $region11: #{tpu_custom_call.1} parent=5 // pred_region
        %s130 = ssub.s32 %s14, 1
      $region12: #{tpu_custom_call.1} parent=5 // pred_fallthru
        _
      %p131 = scmp.lt.s32.totalorder %s14, 2
      // Predicated region
      $region13: #{tpu_custom_call.1} parent=5 // pred_check
        %p132 = pneg %p131
      $region14: #{tpu_custom_call.1} parent=5 // pred_check_branch
        %134 = sbr.rel (%p132) target = $region16
      $region15: #{tpu_custom_call.1} parent=5 // pred_region
        // Predicated region
        $region17: #{tpu_custom_call.1} parent=15 // pred_check
          %p135 = pneg %p52
        $region18: #{tpu_custom_call.1} parent=15 // pred_check_branch
          %137 = sbr.rel (%p135) target = $region20
        $region19: #{tpu_custom_call.1} parent=15 // pred_region
          %s138 = sand.u32 %s42, 1
          %s139 = scalar_lea.sflag [#allocation3], %s138
          %s140 = sand.u32 %s42, 1
          %s141 = smul.addr %s140, 128
          %s142 = scalar_lea.vmem [#allocation2], %s141
          %s143 = sadd.s32 %s21, %s22
          %p144 = scmp.lt.s32.totalorder %s143, 0
          %s145 = scalar_select %p144, %s143, 0
          %s146 = smul.u32 16, %s145
          %s147 = ssub.s32 1, %s146
          %s148 = smul.u32 128, %s147
          %s150 = ssub.s32 2048, %s148
          %151 = vsyncadd %s139, %s150
          %p152 = scmp.ne.s32.totalorder 0, %s148
          %s153 = smul.addr %s146, 128
          %s154 = scalar_lea.hbm %s0, %s153
          %s155 = smul.u32 8, %s147
          %s156 = sshll.u32 %s142, 4
          %s157 = int_to_ptr.vmem [resolvable:$true] %s156
          %s158 = sshll.u32 %s155, 4
          %162 = dma.hbm_to_vmem [thread:$0]  (%p152), %s154, %s158, %s157, %s139, 128, 128, 8
        $region20: #{tpu_custom_call.1} parent=15 // pred_fallthru
          _
        // Predicated region
        $region21: #{tpu_custom_call.1} parent=15 // pred_check
          %p163 = pneg %p84
        $region22: #{tpu_custom_call.1} parent=15 // pred_check_branch
          %165 = sbr.rel (%p163) target = $region24
        $region23: #{tpu_custom_call.1} parent=15 // pred_region
          %s166 = sadd.s32 %s21, %s22
          %p167 = scmp.lt.s32.totalorder %s166, 0
          %s168 = scalar_select %p167, %s166, 0
          %p169 = scmp.lt.s32.totalorder %s168, 0
          %s170 = scalar_select %p169, %s168, 0
          %s171 = scalar_lea.vmem %s1, %s170
          %s172 = sadd.s32 %s21, %s22
          %p173 = scmp.lt.s32.totalorder %s172, 0
          %s174 = scalar_select %p173, %s172, 0
        $region24: #{tpu_custom_call.1} parent=15 // pred_fallthru
          _
      $region16: #{tpu_custom_call.1} parent=5 // pred_fallthru
        _
      %p175 = scmp.le.s32.totalorder 1, %s14
      %p176 = scmp.lt.s32.totalorder %s14, 3
      %p177 = pnand %p175, %p176
      %p178 = pneg %p177
      // Predicated region
      $region25: #{tpu_custom_call.1} parent=5 // pred_check
        _
      $region26: #{tpu_custom_call.1} parent=5 // pred_check_branch
        %180 = sbr.rel (%p177) target = $region28
      $region27: #{tpu_custom_call.1} parent=5 // pred_region
        %s181 = ssub.s32 %s14, 1
        %s182 = sand.u32 %s45, 1
        %s183 = scalar_lea.sflag [#allocation3], %s182
        %s184 = sand.u32 %s45, 1
        %s185 = smul.addr %s184, 128
        %s186 = scalar_lea.vmem [#allocation2], %s185
        // Predicated region
        $region29: #{tpu_custom_call.1} parent=27 // pred_check
          %p187 = pneg %p58
        $region30: #{tpu_custom_call.1} parent=27 // pred_check_branch
          %189 = sbr.rel (%p187) target = $region32
        $region31: #{tpu_custom_call.1} parent=27 // pred_region
          %190 = dma.done %s183, 2048
        $region32: #{tpu_custom_call.1} parent=27 // pred_fallthru
          _
        %s191 = sand.u32 %s45, 1
        %s192 = scalar_lea.sflag [#allocation3], %s191
        %s193 = sand.u32 %s45, 1
        %s194 = smul.addr %s193, 128
        %s195 = scalar_lea.vmem [#allocation2], %s194
        %p196 = pneg %p58
        %p197 = pneg %p55
        %s198 = sadd.s32 %s23, %s24
        %p199 = scmp.lt.s32.totalorder %s198, 0
        %s200 = scalar_select %p199, %s198, 0
        %p201 = scmp.lt.s32.totalorder %s200, 0
        %s202 = scalar_select %p201, %s200, 0
        %s203 = scalar_lea.vmem %s1, %s202
        %p204 = pneg %p90
        %p205 = pneg %p87
        %p206 = pneg %p116
        %p207 = pneg %p113
        %s208 = sand.u32 %s103, 1
        %s209 = scalar_lea.sflag [#allocation4], %s208
        %s210 = sand.u32 %s103, 1
        %s211 = smul.addr %s210, 8
        %s212 = scalar_lea.vmem [#allocation5], %s211
        %s213 = sadd.s32 %s23, %s24
        %p214 = scmp.lt.s32.totalorder %s213, 0
        %s215 = scalar_select %p214, %s213, 0
        %s216 = smul.u32 16, %s215
        %s217 = ssub.s32 1, %s216
        %s218 = smul.u32 128, %s217
        %s219 = sadd.s32 %s23, %s24
        %p220 = scmp.lt.s32.totalorder %s219, 0
        %s221 = scalar_select %p220, %s219, 0
        %p222 = scmp.lt.s32.totalorder %s221, 0
        %s223 = scalar_select %p222, %s221, 0
        %s224 = scalar_lea.vmem %s1, %s223
        %s225 = sadd.s32 %s23, %s24
        %p226 = scmp.lt.s32.totalorder %s225, 0
        %s227 = scalar_select %p226, %s225, 0
        %p228 = scmp.eq.s32.totalorder %s24, 0
        // Predicated region
        $region33: #{tpu_custom_call.1} parent=27 // pred_check
          %p229 = pneg %p228
        $region34: #{tpu_custom_call.1} parent=27 // pred_check_branch
          %231 = sbr.rel (%p229) target = $region36
        $region35: #{tpu_custom_call.1} parent=27 // pred_region
          %232 = vst [vmem:[%s212] sm:$0xff] 0.0
        $region36: #{tpu_custom_call.1} parent=27 // pred_fallthru
          _
        %v233 = vld [vmem:[%s186] sm:$0xff]
        %v234 = vld [vmem:[%s186 + $0x8] sm:$0xff]
        %v235 = vld [vmem:[%s186 + $0x10] sm:$0xff]
        %v236 = vld [vmem:[%s186 + $0x18] sm:$0xff]
        %v237 = vld [vmem:[%s186 + $0x20] sm:$0xff]
        %v238 = vld [vmem:[%s186 + $0x28] sm:$0xff]
        %v239 = vld [vmem:[%s186 + $0x30] sm:$0xff]
        %v240 = vld [vmem:[%s186 + $0x38] sm:$0xff]
        %v241 = vld [vmem:[%s186 + $0x40] sm:$0xff]
        %v242 = vld [vmem:[%s186 + $0x48] sm:$0xff]
        %v243 = vld [vmem:[%s186 + $0x50] sm:$0xff]
        %v244 = vld [vmem:[%s186 + $0x58] sm:$0xff]
        %v245 = vld [vmem:[%s186 + $0x60] sm:$0xff]
        %v246 = vld [vmem:[%s186 + $0x68] sm:$0xff]
        %v247 = vld [vmem:[%s186 + $0x70] sm:$0xff]
        %v248 = vld [vmem:[%s186 + $0x78] sm:$0xff]
        %v249 = vld [vmem:[%s224] sm:$0x1]
        %vm250 = vcmask 261120
        %v251 = vsel %vm250, %v233, -inf
        %252 = vmax.xlane.f32.xlu0 %v251
        %v253 = vpop.xlane.xlu0 %252
        %v254 = vsel %vm250, %v234, -inf
        %255 = vmax.xlane.f32.xlu0 %v254
        %v256 = vpop.xlane.xlu0 %255
        %v257 = vsel %vm250, %v235, -inf
        %258 = vmax.xlane.f32.xlu0 %v257
        %v259 = vpop.xlane.xlu0 %258
        %v260 = vsel %vm250, %v236, -inf
        %261 = vmax.xlane.f32.xlu0 %v260
        %v262 = vpop.xlane.xlu0 %261
        %v263 = vsel %vm250, %v237, -inf
        %264 = vmax.xlane.f32.xlu0 %v263
        %v265 = vpop.xlane.xlu0 %264
        %v266 = vsel %vm250, %v238, -inf
        %267 = vmax.xlane.f32.xlu0 %v266
        %v268 = vpop.xlane.xlu0 %267
        %v269 = vsel %vm250, %v239, -inf
        %270 = vmax.xlane.f32.xlu0 %v269
        %v271 = vpop.xlane.xlu0 %270
        %v272 = vsel %vm250, %v240, -inf
        %273 = vmax.xlane.f32.xlu0 %v272
        %v274 = vpop.xlane.xlu0 %273
        %v275 = vsel %vm250, %v241, -inf
        %276 = vmax.xlane.f32.xlu0 %v275
        %v277 = vpop.xlane.xlu0 %276
        %v278 = vsel %vm250, %v242, -inf
        %279 = vmax.xlane.f32.xlu0 %v278
        %v280 = vpop.xlane.xlu0 %279
        %v281 = vsel %vm250, %v243, -inf
        %282 = vmax.xlane.f32.xlu0 %v281
        %v283 = vpop.xlane.xlu0 %282
        %v284 = vsel %vm250, %v244, -inf
        %285 = vmax.xlane.f32.xlu0 %v284
        %v286 = vpop.xlane.xlu0 %285
        %v287 = vsel %vm250, %v245, -inf
        %288 = vmax.xlane.f32.xlu0 %v287
        %v289 = vpop.xlane.xlu0 %288
        %v290 = vsel %vm250, %v246, -inf
        %291 = vmax.xlane.f32.xlu0 %v290
        %v292 = vpop.xlane.xlu0 %291
        %v293 = vsel %vm250, %v247, -inf
        %294 = vmax.xlane.f32.xlu0 %v293
        %v295 = vpop.xlane.xlu0 %294
        %v296 = vsel %vm250, %v248, -inf
        %297 = vmax.xlane.f32.xlu0 %v296
        %v298 = vpop.xlane.xlu0 %297
        %v299 = vsub.f32 %v233, %v253
        %v300 = vsub.f32 %v234, %v256
        %v301 = vsub.f32 %v235, %v259
        %v302 = vsub.f32 %v236, %v262
        %v303 = vsub.f32 %v237, %v265
        %v304 = vsub.f32 %v238, %v268
        %v305 = vsub.f32 %v239, %v271
        %v306 = vsub.f32 %v240, %v274
        %v307 = vsub.f32 %v241, %v277
        %v308 = vsub.f32 %v242, %v280
        %v309 = vsub.f32 %v243, %v283
        %v310 = vsub.f32 %v244, %v286
        %v311 = vsub.f32 %v245, %v289
        %v312 = vsub.f32 %v246, %v292
        %v313 = vsub.f32 %v247, %v295
        %v314 = vsub.f32 %v248, %v298
        %v315 = vmul.f32 %v299, 1.442695
        %v316 = vpow.pop %v315
        %v317 = vmul.f32 %v300, 1.442695
        %v318 = vpow.pop %v317
        %v319 = vmul.f32 %v301, 1.442695
        %v320 = vpow.pop %v319
        %v321 = vmul.f32 %v302, 1.442695
        %v322 = vpow.pop %v321
        %v323 = vmul.f32 %v303, 1.442695
        %v324 = vpow.pop %v323
        %v325 = vmul.f32 %v304, 1.442695
        %v326 = vpow.pop %v325
        %v327 = vmul.f32 %v305, 1.442695
        %v328 = vpow.pop %v327
        %v329 = vmul.f32 %v306, 1.442695
        %v330 = vpow.pop %v329
        %v331 = vmul.f32 %v307, 1.442695
        %v332 = vpow.pop %v331
        %v333 = vmul.f32 %v308, 1.442695
        %v334 = vpow.pop %v333
        %v335 = vmul.f32 %v309, 1.442695
        %v336 = vpow.pop %v335
        %v337 = vmul.f32 %v310, 1.442695
        %v338 = vpow.pop %v337
        %v339 = vmul.f32 %v311, 1.442695
        %v340 = vpow.pop %v339
        %v341 = vmul.f32 %v312, 1.442695
        %v342 = vpow.pop %v341
        %v343 = vmul.f32 %v313, 1.442695
        %v344 = vpow.pop %v343
        %v345 = vmul.f32 %v314, 1.442695
        %v346 = vpow.pop %v345
        %v347 = vsel %vm250, %v316, 0.0
        %348 = vadd.xlane.f32.xlu0 %v347
        %v349 = vpop.xlane.xlu0 %348
        %v350 = vsel %vm250, %v318, 0.0
        %351 = vadd.xlane.f32.xlu0 %v350
        %v352 = vpop.xlane.xlu0 %351
        %v353 = vsel %vm250, %v320, 0.0
        %354 = vadd.xlane.f32.xlu0 %v353
        %v355 = vpop.xlane.xlu0 %354
        %v356 = vsel %vm250, %v322, 0.0
        %357 = vadd.xlane.f32.xlu0 %v356
        %v358 = vpop.xlane.xlu0 %357
        %v359 = vsel %vm250, %v324, 0.0
        %360 = vadd.xlane.f32.xlu0 %v359
        %v361 = vpop.xlane.xlu0 %360
        %v362 = vsel %vm250, %v326, 0.0
        %363 = vadd.xlane.f32.xlu0 %v362
        %v364 = vpop.xlane.xlu0 %363
        %v365 = vsel %vm250, %v328, 0.0
        %366 = vadd.xlane.f32.xlu0 %v365
        %v367 = vpop.xlane.xlu0 %366
        %v368 = vsel %vm250, %v330, 0.0
        %369 = vadd.xlane.f32.xlu0 %v368
        %v370 = vpop.xlane.xlu0 %369
        %v371 = vsel %vm250, %v332, 0.0
        %372 = vadd.xlane.f32.xlu0 %v371
        %v373 = vpop.xlane.xlu0 %372
        %v374 = vsel %vm250, %v334, 0.0
        %375 = vadd.xlane.f32.xlu0 %v374
        %v376 = vpop.xlane.xlu0 %375
        %v377 = vsel %vm250, %v336, 0.0
        %378 = vadd.xlane.f32.xlu0 %v377
        %v379 = vpop.xlane.xlu0 %378
        %v380 = vsel %vm250, %v338, 0.0
        %381 = vadd.xlane.f32.xlu0 %v380
        %v382 = vpop.xlane.xlu0 %381
        %v383 = vsel %vm250, %v340, 0.0
        %384 = vadd.xlane.f32.xlu0 %v383
        %v385 = vpop.xlane.xlu0 %384
        %v386 = vsel %vm250, %v342, 0.0
        %387 = vadd.xlane.f32.xlu0 %v386
        %v388 = vpop.xlane.xlu0 %387
        %v389 = vsel %vm250, %v344, 0.0
        %390 = vadd.xlane.f32.xlu0 %v389
        %v391 = vpop.xlane.xlu0 %390
        %v392 = vsel %vm250, %v346, 0.0
        %393 = vadd.xlane.f32.xlu0 %v392
        %v394 = vpop.xlane.xlu0 %393
        %v395 = vlog2.pop %v349
        %v396 = vmul.f32 %v395, 0.6931472
        %v397 = vlog2.pop %v352
        %v398 = vmul.f32 %v397, 0.6931472
        %v399 = vlog2.pop %v355
        %v400 = vmul.f32 %v399, 0.6931472
        %v401 = vlog2.pop %v358
        %v402 = vmul.f32 %v401, 0.6931472
        %v403 = vlog2.pop %v361
        %v404 = vmul.f32 %v403, 0.6931472
        %v405 = vlog2.pop %v364
        %v406 = vmul.f32 %v405, 0.6931472
        %v407 = vlog2.pop %v367
        %v408 = vmul.f32 %v407, 0.6931472
        %v409 = vlog2.pop %v370
        %v410 = vmul.f32 %v409, 0.6931472
        %v411 = vlog2.pop %v373
        %v412 = vmul.f32 %v411, 0.6931472
        %v413 = vlog2.pop %v376
        %v414 = vmul.f32 %v413, 0.6931472
        %v415 = vlog2.pop %v379
        %v416 = vmul.f32 %v415, 0.6931472
        %v417 = vlog2.pop %v382
        %v418 = vmul.f32 %v417, 0.6931472
        %v419 = vlog2.pop %v385
        %v420 = vmul.f32 %v419, 0.6931472
        %v421 = vlog2.pop %v388
        %v422 = vmul.f32 %v421, 0.6931472
        %v423 = vlog2.pop %v391
        %v424 = vmul.f32 %v423, 0.6931472
        %v425 = vlog2.pop %v394
        %v426 = vmul.f32 %v425, 0.6931472
        %v427 = vsub.f32 %v299, %v396
        %v428 = vsub.f32 %v300, %v398
        %v429 = vsub.f32 %v301, %v400
        %v430 = vsub.f32 %v302, %v402
        %v431 = vsub.f32 %v303, %v404
        %v432 = vsub.f32 %v304, %v406
        %v433 = vsub.f32 %v305, %v408
        %v434 = vsub.f32 %v306, %v410
        %v435 = vsub.f32 %v307, %v412
        %v436 = vsub.f32 %v308, %v414
        %v437 = vsub.f32 %v309, %v416
        %v438 = vsub.f32 %v310, %v418
        %v439 = vsub.f32 %v311, %v420
        %v440 = vsub.f32 %v312, %v422
        %v441 = vsub.f32 %v313, %v424
        %v442 = vsub.f32 %v314, %v426
        %v443 = vrcp.pop %v349
        %v444 = vrcp.pop %v352
        %v445 = vrcp.pop %v355
        %v446 = vrcp.pop %v358
        %v447 = vrcp.pop %v361
        %v448 = vrcp.pop %v364
        %v449 = vrcp.pop %v367
        %v450 = vrcp.pop %v370
        %v451 = vrcp.pop %v373
        %v452 = vrcp.pop %v376
        %v453 = vrcp.pop %v379
        %v454 = vrcp.pop %v382
        %v455 = vrcp.pop %v385
        %v456 = vrcp.pop %v388
        %v457 = vrcp.pop %v391
        %v458 = vrcp.pop %v394
        %v459 = vmul.f32 %v316, %v443
        %v460 = vmul.f32 %v318, %v444
        %v461 = vmul.f32 %v320, %v445
        %v462 = vmul.f32 %v322, %v446
        %v463 = vmul.f32 %v324, %v447
        %v464 = vmul.f32 %v326, %v448
        %v465 = vmul.f32 %v328, %v449
        %v466 = vmul.f32 %v330, %v450
        %v467 = vmul.f32 %v332, %v451
        %v468 = vmul.f32 %v334, %v452
        %v469 = vmul.f32 %v336, %v453
        %v470 = vmul.f32 %v338, %v454
        %v471 = vmul.f32 %v340, %v455
        %v472 = vmul.f32 %v342, %v456
        %v473 = vmul.f32 %v344, %v457
        %v474 = vmul.f32 %v346, %v458
        %v475 = vsub.f32 1.0, %v459
        %v476 = vsub.f32 1.0, %v460
        %v477 = vsub.f32 1.0, %v461
        %v478 = vsub.f32 1.0, %v462
        %v479 = vsub.f32 1.0, %v463
        %v480 = vsub.f32 1.0, %v464
        %v481 = vsub.f32 1.0, %v465
        %v482 = vsub.f32 1.0, %v466
        %v483 = vsub.f32 1.0, %v467
        %v484 = vsub.f32 1.0, %v468
        %v485 = vsub.f32 1.0, %v469
        %v486 = vsub.f32 1.0, %v470
        %v487 = vsub.f32 1.0, %v471
        %v488 = vsub.f32 1.0, %v472
        %v489 = vsub.f32 1.0, %v473
        %v490 = vsub.f32 1.0, %v474
        %v491 = vmul.f32 %v475, %v475
        %v492 = vmul.f32 %v476, %v476
        %v493 = vmul.f32 %v477, %v477
        %v494 = vmul.f32 %v478, %v478
        %v495 = vmul.f32 %v479, %v479
        %v496 = vmul.f32 %v480, %v480
        %v497 = vmul.f32 %v481, %v481
        %v498 = vmul.f32 %v482, %v482
        %v499 = vmul.f32 %v483, %v483
        %v500 = vmul.f32 %v484, %v484
        %v501 = vmul.f32 %v485, %v485
        %v502 = vmul.f32 %v486, %v486
        %v503 = vmul.f32 %v487, %v487
        %v504 = vmul.f32 %v488, %v488
        %v505 = vmul.f32 %v489, %v489
        %v506 = vmul.f32 %v490, %v490
        %v507 = vmul.f32 %v491, -0.25
        %v508 = vmul.f32 %v492, -0.25
        %v509 = vmul.f32 %v493, -0.25
        %v510 = vmul.f32 %v494, -0.25
        %v511 = vmul.f32 %v495, -0.25
        %v512 = vmul.f32 %v496, -0.25
        %v513 = vmul.f32 %v497, -0.25
        %v514 = vmul.f32 %v498, -0.25
        %v515 = vmul.f32 %v499, -0.25
        %v516 = vmul.f32 %v500, -0.25
        %v517 = vmul.f32 %v501, -0.25
        %v518 = vmul.f32 %v502, -0.25
        %v519 = vmul.f32 %v503, -0.25
        %v520 = vmul.f32 %v504, -0.25
        %v521 = vmul.f32 %v505, -0.25
        %v522 = vmul.f32 %v506, -0.25
        %v523 = vmul.f32 %v507, %v427
        %v524 = vmul.f32 %v508, %v428
        %v525 = vmul.f32 %v509, %v429
        %v526 = vmul.f32 %v510, %v430
        %v527 = vmul.f32 %v511, %v431
        %v528 = vmul.f32 %v512, %v432
        %v529 = vmul.f32 %v513, %v433
        %v530 = vmul.f32 %v514, %v434
        %v531 = vmul.f32 %v515, %v435
        %v532 = vmul.f32 %v516, %v436
        %v533 = vmul.f32 %v517, %v437
        %v534 = vmul.f32 %v518, %v438
        %v535 = vmul.f32 %v519, %v439
        %v536 = vmul.f32 %v520, %v440
        %v537 = vmul.f32 %v521, %v441
        %v538 = vmul.f32 %v522, %v442
        %s539 = sadd.s32 %s23, %s24
        %s540 = smul.u32 %s539, 128
        %v541 = vlaneseq
        %v542 = vshrl.u32 %v541, 7
        %v543 = vadd.s32 %v542, 8
        %v544 = vadd.s32 %v542, 16
        %v545 = vadd.s32 %v542, 24
        %v546 = vadd.s32 %v542, 32
        %v547 = vadd.s32 %v542, 40
        %v548 = vadd.s32 %v542, 48
        %v549 = vadd.s32 %v542, 56
        %v550 = vadd.s32 %v542, 64
        %v551 = vadd.s32 %v542, 72
        %v552 = vadd.s32 %v542, 80
        %v553 = vadd.s32 %v542, 88
        %v554 = vadd.s32 %v542, 96
        %v555 = vadd.s32 %v542, 104
        %v556 = vadd.s32 %v542, 112
        %v557 = vadd.s32 %v542, 120
        %v558 = vstv %s540
        %v559 = vadd.s32 %v542, %v558
        %v560 = vadd.s32 %v543, %v558
        %v561 = vadd.s32 %v544, %v558
        %v562 = vadd.s32 %v545, %v558
        %v563 = vadd.s32 %v546, %v558
        %v564 = vadd.s32 %v547, %v558
        %v565 = vadd.s32 %v548, %v558
        %v566 = vadd.s32 %v549, %v558
        %v567 = vadd.s32 %v550, %v558
        %v568 = vadd.s32 %v551, %v558
        %v569 = vadd.s32 %v552, %v558
        %v570 = vadd.s32 %v553, %v558
        %v571 = vadd.s32 %v554, %v558
        %v572 = vadd.s32 %v555, %v558
        %v573 = vadd.s32 %v556, %v558
        %v574 = vadd.s32 %v557, %v558
        %vm575 = vcmp.lt.s32.totalorder %v559, 8
        %vm576 = vcmp.lt.s32.totalorder %v560, 8
        %vm577 = vcmp.lt.s32.totalorder %v561, 8
        %vm578 = vcmp.lt.s32.totalorder %v562, 8
        %vm579 = vcmp.lt.s32.totalorder %v563, 8
        %vm580 = vcmp.lt.s32.totalorder %v564, 8
        %vm581 = vcmp.lt.s32.totalorder %v565, 8
        %vm582 = vcmp.lt.s32.totalorder %v566, 8
        %vm583 = vcmp.lt.s32.totalorder %v567, 8
        %vm584 = vcmp.lt.s32.totalorder %v568, 8
        %vm585 = vcmp.lt.s32.totalorder %v569, 8
        %vm586 = vcmp.lt.s32.totalorder %v570, 8
        %vm587 = vcmp.lt.s32.totalorder %v571, 8
        %vm588 = vcmp.lt.s32.totalorder %v572, 8
        %vm589 = vcmp.lt.s32.totalorder %v573, 8
        %vm590 = vcmp.lt.s32.totalorder %v574, 8
        %v591 = vsel %vm575, %v523, 0.0
        %v592 = vsel %vm576, %v524, 0.0
        %v593 = vsel %vm577, %v525, 0.0
        %v594 = vsel %vm578, %v526, 0.0
        %v595 = vsel %vm579, %v527, 0.0
        %v596 = vsel %vm580, %v528, 0.0
        %v597 = vsel %vm581, %v529, 0.0
        %v598 = vsel %vm582, %v530, 0.0
        %v599 = vsel %vm583, %v531, 0.0
        %v600 = vsel %vm584, %v532, 0.0
        %v601 = vsel %vm585, %v533, 0.0
        %v602 = vsel %vm586, %v534, 0.0
        %v603 = vsel %vm587, %v535, 0.0
        %v604 = vsel %vm588, %v536, 0.0
        %v605 = vsel %vm589, %v537, 0.0
        %v606 = vsel %vm590, %v538, 0.0
        %607 = vmatprep.subr.mxu0 0.0
        %608 = vmatpush1.msra.mxu0 %v591
        %609 = vmatprep.subr.mxu0 0.0
        %610 = vmatpush1.msra.mxu0 %v592
        %611 = vmatprep.subr.mxu0 0.0
        %612 = vmatpush1.msra.mxu0 %v593
        %613 = vmatprep.subr.mxu0 0.0
        %614 = vmatpush1.msra.mxu0 %v594
        %615 = vmatprep.subr.mxu0 0.0
        %616 = vmatpush1.msra.mxu0 %v595
        %617 = vmatprep.subr.mxu0 0.0
        %618 = vmatpush1.msra.mxu0 %v596
        %619 = vmatprep.subr.mxu0 0.0
        %620 = vmatpush1.msra.mxu0 %v597
        %621 = vmatprep.subr.mxu0 0.0
        %622 = vmatpush1.msra.mxu0 %v598
        %623 = vmatprep.subr.mxu0 0.0
        %624 = vmatpush1.msra.mxu0 %v599
        %625 = vmatprep.subr.mxu0 0.0
        %626 = vmatpush1.msra.mxu0 %v600
        %627 = vmatprep.subr.mxu0 0.0
        %628 = vmatpush1.msra.mxu0 %v601
        %629 = vmatprep.subr.mxu0 0.0
        %630 = vmatpush1.msra.mxu0 %v602
        %631 = vmatprep.subr.mxu0 0.0
        %632 = vmatpush1.msra.mxu0 %v603
        %633 = vmatprep.subr.mxu0 0.0
        %634 = vmatpush1.msra.mxu0 %v604
        %635 = vmatprep.subr.mxu0 0.0
        %636 = vmatpush1.msra.mxu0 %v605
        %637 = vmatprep.subr.mxu0 0.0
        %638 = vmatpush1.msra.mxu0 %v606
        %639 = vmatprep.subr.mxu0 0.0
        %640 = vmatpush1.msra.mxu0 0.0
        %641 = vmatprep.subr.mxu0 0.0
        %642 = vmatpush1.msra.mxu0 0.0
        %643 = vmatprep.subr.mxu0 0.0
        %644 = vmatpush1.msra.mxu0 0.0
        %645 = vmatprep.subr.mxu0 0.0
        %646 = vmatpush1.msra.mxu0 0.0
        %647 = vmatprep.subr.mxu0 0.0
        %648 = vmatpush1.msra.mxu0 0.0
        %649 = vmatprep.subr.mxu0 0.0
        %650 = vmatpush1.msra.mxu0 0.0
        %651 = vmatprep.subr.mxu0 0.0
        %652 = vmatpush1.msra.mxu0 0.0
        %653 = vmatprep.subr.mxu0 0.0
        %654 = vmatpush1.msra.mxu0 0.0
        %655 = vmatprep.subr.mxu0 0.0
        %656 = vmatpush1.msra.mxu0 0.0
        %657 = vmatprep.subr.mxu0 0.0
        %658 = vmatpush1.msra.mxu0 0.0
        %659 = vmatprep.subr.mxu0 0.0
        %660 = vmatpush1.msra.mxu0 0.0
        %661 = vmatprep.subr.mxu0 0.0
        %662 = vmatpush1.msra.mxu0 0.0
        %663 = vmatprep.subr.mxu0 0.0
        %664 = vmatpush1.msra.mxu0 0.0
        %665 = vmatprep.subr.mxu0 0.0
        %666 = vmatpush1.msra.mxu0 0.0
        %667 = vmatprep.subr.mxu0 0.0
        %668 = vmatpush1.msra.mxu0 0.0
        %669 = vmatprep.subr.mxu0 0.0
        %670 = vmatpush1.msra.mxu0 0.0
        %671 = vmatprep.mubr.f32.mxu0 0.0
        %672 = vmatmul.mubr.f32.gmra.mrb[0].mxu0 %v249
        %v673 = vpop.f32.mrb[0].mxu0
        %v674 = vadd.f32 0.0, %v673
        %v675 = vpop.f32.mrb[0].mxu0
        %676 = vdwg.mxu0
        %v677 = vld [vmem:[%s212] sm:$0xff]
        %s679 = vtos %v674
        %v680 = vstv %s679
        %v682 = vadd.f32 %v677, %v680
        %683 = vst [vmem:[%s212] sm:$0xff] %v682
        %s684 = sand.u32 %s103, 1
        %s685 = scalar_lea.sflag [#allocation4], %s684
        %s686 = sand.u32 %s103, 1
        %s687 = smul.addr %s686, 8
        %s688 = scalar_lea.vmem [#allocation5], %s687
        // Predicated region
        $region37: #{tpu_custom_call.1} parent=27 // pred_check
          %p689 = pneg %p113
        $region38: #{tpu_custom_call.1} parent=27 // pred_check_branch
          %691 = sbr.rel (%p689) target = $region40
        $region39: #{tpu_custom_call.1} parent=27 // pred_region
          %s693 = ssub.s32 128, 128
          %694 = vsyncadd %s685, %s693
          %s695 = smul.addr %s23, 128
          %s696 = scalar_lea.hbm %s2, %s695
          %s698 = sshll.u32 %s688, 4
          %s699 = int_to_ptr.vmem [resolvable:$true] %s698
          %701 = dma.vmem_to_hbm [thread:$0]  %s699, 128, %s696, %s685
        $region40: #{tpu_custom_call.1} parent=27 // pred_fallthru
          _
      $region28: #{tpu_custom_call.1} parent=5 // pred_fallthru
        _
      %p702 = scmp.le.s32.totalorder 2, %s14
      // Predicated region
      $region41: #{tpu_custom_call.1} parent=5 // pred_check
        %p703 = pneg %p702
      $region42: #{tpu_custom_call.1} parent=5 // pred_check_branch
        %705 = sbr.rel (%p703) target = $region44
      $region43: #{tpu_custom_call.1} parent=5 // pred_region
        %s706 = ssub.s32 %s14, 2
        // Predicated region
        $region45: #{tpu_custom_call.1} parent=43 // pred_check
          %p707 = pneg %p119
        $region46: #{tpu_custom_call.1} parent=43 // pred_check_branch
          %709 = sbr.rel (%p707) target = $region48
        $region47: #{tpu_custom_call.1} parent=43 // pred_region
          %s710 = sand.u32 %s104, 1
          %s711 = scalar_lea.sflag [#allocation4], %s710
          %s712 = sand.u32 %s104, 1
          %s713 = smul.addr %s712, 8
          %s714 = scalar_lea.vmem [#allocation5], %s713
          %715 = dma.done %s711, 128
        $region48: #{tpu_custom_call.1} parent=43 // pred_fallthru
          _
      $region44: #{tpu_custom_call.1} parent=5 // pred_fallthru
        _
    $region6: #{tpu_custom_call.1} parent=1 // loop_footer
      %s18 = sadd.s32 1, %s14
    $region7: #{tpu_custom_call.1} parent=1 // loop_footer_branch
      %13 = sbr.rel target = $region3
    $region8: #{tpu_custom_call.1} parent=1 // loop_exit
      _
    %716 = vsyncpa [#allocation3], 1
    %s717 = scalar_lea.sflag [#allocation3], 1
    %718 = vsyncpa %s717, 1
    %719 = vsyncpa [#allocation4], 1
    %s720 = scalar_lea.sflag [#allocation4], 1
    %721 = vsyncpa %s720, 1

</llo_original>
